<compile_context>
chip_gen: v7x
topology: tpu7x:2x2x1
jax: 0.10.0
libtpu: 0.0.40
codegen_flags: <defaults>
</compile_context>

<pallas_src>
import jax
import jax.numpy as jnp
from jax.experimental import pallas as pl
from jax.experimental.pallas import tpu as pltpu


_LANE = 128


# ----------------------------------------------------------------------------
# Kernel body: x block (bt, ft) broadcast-added with pos block (1, ft).
# ----------------------------------------------------------------------------
def _add_pos_kernel(x_ref, pos_ref, o_ref):
    o_ref[...] = (x_ref[...] + pos_ref[...]).astype(o_ref.dtype)


# ----------------------------------------------------------------------------
# Hardware / tiling helpers
# ----------------------------------------------------------------------------
def _tpu_vmem_capacity():
    try:
        return int(pltpu.get_tpu_info().vmem_capacity_bytes)
    except Exception:
        return 64 << 20  # conservative fallback (v7x-sized)


def _choose_tiles_2d(B, F, sub, budget):
    """Pick (bt, ft) for (B, F) blocks, F % 128 == 0.

    Guarantees:
      * ft is a multiple of 128 (or == F),
      * bt is a multiple of `sub` (or == B),
      * bt * ft <= budget (elements), so the actual tile never exceeds the
        requested per-tile byte budget (fixes the old sublane-factor overshoot).
    """
    min_rows = min(B, sub)
    if F * min_rows <= budget:
        ft = F                                            # full feature extent
    else:
        ft = max(_LANE, (budget // min_rows) // _LANE * _LANE)

    rows = max(1, budget // ft)
    bt = min(B, rows)                                     # hard cap at budget
    if bt < B:
        bt = (bt // sub) * sub                            # sublane-align down
        if bt < sub:
            bt = min(B, sub)                              # smallest legal tile
    return bt, ft


def _vmem_limit(x_tile_bytes, out_tile_bytes, pos_tile_bytes, vmem_cap):
    # 2x double-buffered x + 2x double-buffered out + 2x pos + compiler scratch,
    # clamped to the chip's physical VMEM minus ~8 MiB headroom.
    need = 2 * x_tile_bytes + 2 * out_tile_bytes + 2 * pos_tile_bytes + (2 << 20)
    clamp = max(16 << 20, vmem_cap - (8 << 20))
    return int(min(max(need, 16 << 20), clamp))


# ----------------------------------------------------------------------------
# Pallas call wrapper (lane-dense 2-D path)
# ----------------------------------------------------------------------------
def _pallas_add_2d(x2, pos2, bt, ft, out_dtype, vmem_limit, in_place):
    B, F = x2.shape
    grid = (pl.cdiv(F, ft), pl.cdiv(B, bt))               # batch innermost
    return pl.pallas_call(
        _add_pos_kernel,
        out_shape=jax.ShapeDtypeStruct((B, F), out_dtype),
        grid_spec=pltpu.PrefetchScalarGridSpec(
            num_scalar_prefetch=0,
            grid=grid,
            in_specs=[
                pl.BlockSpec((bt, ft), lambda f, b: (b, f)),
                # pos: block index constant across the inner (batch) axis ->
                # the tile stays resident in VMEM for the whole inner loop.
                pl.BlockSpec((1, ft), lambda f, b: (0, f)),
            ],
            out_specs=pl.BlockSpec((bt, ft), lambda f, b: (b, f)),
        ),
        compiler_params=pltpu.CompilerParams(
            # Feature-tile axis parallel (2-TC split on v7x); inner batch axis
            # sequential so the pos-tile residency is guaranteed per core.
            dimension_semantics=("parallel", "arbitrary"),
            vmem_limit_bytes=vmem_limit,
        ),
        input_output_aliases={0: 0} if in_place else {},
    )(x2, pos2)


# ----------------------------------------------------------------------------
# Public wrapper
# ----------------------------------------------------------------------------
def learned_positional_embedding_1d(
    x,
    pos_embedding,
    *,
    in_place=False,
    force_pallas=False,
    max_tile_bytes=None,
):
    """x: (B, S, D); pos_embedding: (1, S, D). Returns x + pos_embedding.

    in_place      : alias the output onto x (only when dtypes match; caller
                    should donate x, otherwise XLA inserts a copy).
    force_pallas  : skip the tiny-input XLA bypass (used for testing).
    max_tile_bytes: per-tile VMEM budget for the x/out blocks (default is
                    generation-aware).
    """
    B, S, D = x.shape
    assert pos_embedding.shape == (1, S, D)

    # Match framework type-promotion: compute/emit in the promoted dtype.
    out_dtype = jnp.result_type(x.dtype, pos_embedding.dtype)
    pos = pos_embedding.astype(out_dtype)

    x_item = jnp.dtype(x.dtype).itemsize
    out_item = jnp.dtype(out_dtype).itemsize
    pos_item = jnp.dtype(pos.dtype).itemsize

    vmem_cap = _tpu_vmem_capacity()
    if max_tile_bytes is None:
        # 128-MiB-VMEM chips (v5e/v6e): 16 MiB tiles; 64-MiB v7x: 8 MiB tiles.
        max_tile_bytes = (16 << 20) if vmem_cap >= (100 << 20) else (8 << 20)

    F = S * D
    total_bytes = B * F * max(x_item, out_item)

    if F % _LANE != 0:
        # Lane-ragged last dim: a Pallas version would lower to masked
        # vst.msk partial stores; XLA's fused add is already near roofline.
        # TODO(synk): optionally pad D up to a multiple of 128 and slice.
        return (x + pos).astype(out_dtype)

    # Tiny inputs: launch + pipeline warm-up dominates below a couple of tiles.
    if not force_pallas and total_bytes < 2 * max_tile_bytes:
        return (x + pos).astype(out_dtype)

    in_place = bool(in_place) and (x.dtype == out_dtype)

    # Sublane packing: 8 for f32, 16 for bf16, 32 for 8-bit.
    sub = max(8, 32 // min(x_item, out_item))
    budget = max(sub * _LANE, max_tile_bytes // max(x_item, out_item))

    bt, ft = _choose_tiles_2d(B, F, sub, budget)
    vmem_limit = _vmem_limit(
        bt * ft * x_item, bt * ft * out_item, ft * pos_item, vmem_cap
    )

    out2 = _pallas_add_2d(
        x.reshape(B, F), pos.reshape(1, F), bt, ft, out_dtype, vmem_limit, in_place
    )
    return out2.reshape(B, S, D)


if __name__ == "__main__":
    key = jax.random.PRNGKey(0)
    kx, kp = jax.random.split(key)

    # Shapes implied by the module: (batch, seq_len, dim).
    batch, seq_len, dim = 2, 8, 32
    x = jax.random.normal(kx, (batch, seq_len, dim), dtype=jnp.float32)
    # PyTorch init is zeros; use a small deterministic non-zero init so the
    # add is actually exercised.
    pos_embedding = 0.01 * jax.random.normal(
        kp, (1, seq_len, dim), dtype=jnp.float32
    )

    out = learned_positional_embedding_1d(x, pos_embedding, force_pallas=True)
    out = jax.block_until_ready(out)
    ref = x + pos_embedding
    assert out.shape == (batch, seq_len, dim)
    assert out.dtype == ref.dtype
    assert jnp.allclose(out, ref, atol=1e-6, rtol=1e-6)

    # Multi-tile path: artificially small tile budget so grid > 1, pos-tile
    # residency across the inner batch loop, and a ragged final feature block
    # are all exercised.
    b2, s2, d2 = 5, 65, 128
    kx2, kp2 = jax.random.split(jax.random.PRNGKey(1))
    x2 = jax.random.normal(kx2, (b2, s2, d2), dtype=jnp.float32)
    pos2 = 0.01 * jax.random.normal(kp2, (1, s2, d2), dtype=jnp.float32)
    out2 = learned_positional_embedding_1d(
        x2, pos2, force_pallas=True, max_tile_bytes=16 * 1024
    )
    out2 = jax.block_until_ready(out2)
    assert jnp.allclose(out2, x2 + pos2, atol=1e-6, rtol=1e-6)

    # Mixed-dtype promotion path: bf16 activations + f32 learned embedding
    # must produce f32 output (computed in f32 inside the kernel).
    b3, s3, d3 = 4, 16, 64
    kx3, kp3 = jax.random.split(jax.random.PRNGKey(2))
    x3 = jax.random.normal(kx3, (b3, s3, d3), dtype=jnp.bfloat16)
    pos3 = 0.01 * jax.random.normal(kp3, (1, s3, d3), dtype=jnp.float32)
    out3 = learned_positional_embedding_1d(x3, pos3, force_pallas=True)
    out3 = jax.block_until_ready(out3)
    ref3 = x3 + pos3
    assert out3.dtype == ref3.dtype == jnp.float32
    assert jnp.allclose(out3, ref3, atol=1e-5, rtol=1e-5)

    print("KERNEL_OK")
</pallas_src>

<mosaic_0001>
module attributes {stable_mosaic.version = 11 : i64} {
  func.func @_add_pos_kernel(%arg0: i32, %arg1: i32, %arg2: memref<2x256xf32, #tpu.memory_space<vmem>>, %arg3: memref<1x256xf32, #tpu.memory_space<vmem>>, %arg4: memref<2x256xf32, #tpu.memory_space<vmem>>) attributes {dimension_semantics = [#tpu.dimension_semantics<parallel>, #tpu.dimension_semantics<arbitrary>], iteration_bounds = array<i64: 1, 1>, scalar_prefetch = 0 : i64, scratch_operands = 0 : i64, tpu.core_type = #tpu.core_type<tc>, window_params = [{transform_indices = @transform_0, window_bounds = array<i64: 2, 256>}, {transform_indices = @transform_1, window_bounds = array<i64: 1, 256>}, {transform_indices = @transform_2, window_bounds = array<i64: 2, 256>}]} {
    %c0 = arith.constant 0 : index
    %c0_0 = arith.constant 0 : index
    %0 = vector.load %arg2[%c0, %c0_0] : memref<2x256xf32, #tpu.memory_space<vmem>>, vector<2x256xf32>
    %c0_1 = arith.constant 0 : index
    %c0_2 = arith.constant 0 : index
    %1 = vector.load %arg3[%c0_1, %c0_2] : memref<1x256xf32, #tpu.memory_space<vmem>>, vector<1x256xf32>
    %2 = vector.broadcast %1 : vector<1x256xf32> to vector<2x256xf32>
    %3 = arith.addf %0, %2 : vector<2x256xf32>
    %c0_3 = arith.constant 0 : index
    %c0_4 = arith.constant 0 : index
    %4 = vector.load %arg4[%c0_3, %c0_4] : memref<2x256xf32, #tpu.memory_space<vmem>>, vector<2x256xf32>
    tpu.vector_store %arg4[%c0_3, %c0_4], %3 {strides = array<i32>} : memref<2x256xf32, #tpu.memory_space<vmem>>, vector<2x256xf32>,
    return
  }
  func.func @transform_0(%arg0: i32, %arg1: i32) -> (i32, i32) {
    %c0_i32 = arith.constant 0 : i32
    return %arg1, %arg0 : i32, i32
  }
  func.func @transform_1(%arg0: i32, %arg1: i32) -> (i32, i32) {
    %c0_i32 = arith.constant 0 : i32
    %c0_i32_0 = arith.constant 0 : i32
    return %c0_i32, %arg0 : i32, i32
  }
  func.func @transform_2(%arg0: i32, %arg1: i32) -> (i32, i32) {
    %c0_i32 = arith.constant 0 : i32
    return %arg1, %arg0 : i32, i32
  }
}

</mosaic_0001>

<llo_original>
// kernel: tpu_custom_call.1
$region0: #{tpu_custom_call.1}
  #allocation0 [shape = 'u32[]', space=smem, size = 0x4, offset = 0x4, fixed_abs, tag = 'smem constant byte address 0x4 - core index']
  #allocation1 [shape = 'u32[144,128]{1,0:T(1,128)}', space=vmem, size = 0x12000, scoped, tag = 'internal scratch']
  %s0 = inlined_call_operand.hbm [shape: f32[2,256], index: 0, kind: input, shape index: {}]
  %s1 = inlined_call_operand.vmem [shape: f32[1,256], index: 1, kind: input, shape index: {}]
  %s2 = inlined_call_operand.hbm [shape: f32[2,256], index: 2, kind: output, shape index: {}]
  %s3 = sld [smem:[#allocation0]]
  $region22: #{tpu_custom_call.1} parent=0
    _
  %s5 = ssub.s32 1, %s3
  %s6 = scalar_select 0, %s5, %s3
  $region1: #{tpu_custom_call.1} parent=0
    #allocation2 [shape = 'u8[2048]{0}', space=vmem, size = 0x800, scoped, tag = 'input window, operand 0, single buffered']
    #allocation3 [shape = 's32[1]{0}', space=sflag, size = 0x4, scoped, tag = 'scoped memory for tpu_custom_call.1']
    #allocation4 [shape = 's32[1]{0}', space=sflag, size = 0x4, scoped, tag = 'scoped memory for tpu_custom_call.1']
    #allocation5 [shape = 'u8[2048]{0}', space=vmem, size = 0x800, scoped, tag = 'output window, operand 0, single buffered']
    %7 = vsyncpa [#allocation3], 0
    %8 = vsyncpa [#allocation4], 0
    // Predicated region
    $region2: #{tpu_custom_call.1} parent=1 // pred_check
      _
    $region3: #{tpu_custom_call.1} parent=1 // pred_check_branch
      %10 = sbr.rel (0) target = $region5
    $region4: #{tpu_custom_call.1} parent=1 // pred_region
      %s12 = ssub.s32 64, 64
      %13 = vsyncadd [#allocation3], %s12
      %s15 = sshll.u32 [#allocation2], 4
      %s16 = int_to_ptr.vmem [resolvable:$true] %s15
      %18 = dma.hbm_to_vmem [thread:$0]  %s0, 64, %s16, [#allocation3]
    $region5: #{tpu_custom_call.1} parent=1 // pred_fallthru
      _
    // Predicated region
    $region6: #{tpu_custom_call.1} parent=1 // pred_check
      _
    $region7: #{tpu_custom_call.1} parent=1 // pred_check_branch
      %20 = sbr.rel (0) target = $region9
    $region8: #{tpu_custom_call.1} parent=1 // pred_region
      _
    $region9: #{tpu_custom_call.1} parent=1 // pred_fallthru
      _
    // Predicated region
    $region10: #{tpu_custom_call.1} parent=1 // pred_check
      _
    $region11: #{tpu_custom_call.1} parent=1 // pred_check_branch
      %22 = sbr.rel (0) target = $region13
    $region12: #{tpu_custom_call.1} parent=1 // pred_region
      %23 = dma.done [#allocation3], 64
    $region13: #{tpu_custom_call.1} parent=1 // pred_fallthru
      _
    %v24 = vld [vmem:[#allocation2] sm:$0xf]
    %v25 = vld [vmem:[%s1] sm:$0x3]
    %v27 = vlaneseq
    %v28 = vshrl.u32 %v27, 7
    %v29 = vsub.s32 0, %v28
    %v30 = vrot.slane %v25, %v29
    %v31 = vlaneseq
    %v32 = vshrl.u32 %v31, 7
    %v33 = vsub.s32 1, %v32
    %v34 = vrot.slane %v25, %v33
    %v35 = vcombine.low %v30, %v34
    %v37 = vunpack.c.l.s4 1983009808
    %v38 = vunpack.c.0.s8 %v37
    %v39 = vlaneseq
    %v40 = vshrl.u32 %v39, 7
    %v41 = vsub.s32 %v38, %v40
    %v42 = vrot.slane %v35, %v41
    %v44 = vadd.f32 %v24, %v42
    %45 = vst [vmem:[#allocation5] sm:$0xf] %v44
    // Predicated region
    $region14: #{tpu_custom_call.1} parent=1 // pred_check
      _
    $region15: #{tpu_custom_call.1} parent=1 // pred_check_branch
      %47 = sbr.rel (0) target = $region17
    $region16: #{tpu_custom_call.1} parent=1 // pred_region
      %s49 = ssub.s32 64, 64
      %50 = vsyncadd [#allocation4], %s49
      %s52 = sshll.u32 [#allocation5], 4
      %s53 = int_to_ptr.vmem [resolvable:$true] %s52
      %55 = dma.vmem_to_hbm [thread:$0]  %s53, 64, %s2, [#allocation4]
    $region17: #{tpu_custom_call.1} parent=1 // pred_fallthru
      _
    // Predicated region
    $region18: #{tpu_custom_call.1} parent=1 // pred_check
      _
    $region19: #{tpu_custom_call.1} parent=1 // pred_check_branch
      %57 = sbr.rel (0) target = $region21
    $region20: #{tpu_custom_call.1} parent=1 // pred_region
      %58 = dma.done [#allocation4], 64
    $region21: #{tpu_custom_call.1} parent=1 // pred_fallthru
      _
    %59 = vsyncpa [#allocation3], 1
    %60 = vsyncpa [#allocation4], 1

</llo_original>
